<compile_context>
chip_gen: v5e
topology: v5e:2x2
jax: 0.10.0
libtpu: 0.0.40
codegen_flags: <defaults>
</compile_context>

<pallas_src>
import jax
import jax.numpy as jnp
from jax.experimental import pallas as pl
from jax.experimental.pallas import tpu as pltpu

IN_DIM = 500      # args.prompt == False -> 500 (no token_num appended)
HID_DIM = 128
OUT_DIM = 500
IN_PAD = 512      # lane-dense (multiple of 128) padded feature width
OUT_PAD = 512


def _round_up(n, m):
    return ((n + m - 1) // m) * m


def ae_forward_kernel(x_ref, w1_ref, b1_ref, w2_ref, b2_ref, feat_ref, rex_ref):
    # One batch tile per grid step; weights are the same block every step
    # (constant index_map) so they stay resident in VMEM.
    x = x_ref[...]                                                    # [TM, 512]
    # encoder: Linear(500->128)  (padded K columns are zero -> no effect)
    feat = jnp.dot(x, w1_ref[...],
                   preferred_element_type=jnp.float32) + b1_ref[...]  # [TM, 128]
    feat_ref[...] = feat.astype(feat_ref.dtype)
    # decoder: Linear(128->500)  (no activation in the non-prompt branch)
    rex = jnp.dot(feat, w2_ref[...],
                  preferred_element_type=jnp.float32) + b2_ref[...]   # [TM, 512]
    rex_ref[...] = rex.astype(rex_ref.dtype)


def prepare_params(w_enc, b_enc, w_dec, b_dec):
    """One-time layout prep (NOT in the hot path).

    PyTorch Linear weights are (out, in); transpose to (in, out) and zero-pad
    the 500-wide axes to 512 so the kernel sees a lane-dense layout.
    """
    w_enc = jnp.asarray(w_enc, jnp.float32)          # (128, 500)
    w_dec = jnp.asarray(w_dec, jnp.float32)          # (500, 128)
    w1 = jnp.zeros((IN_PAD, HID_DIM), jnp.float32).at[:IN_DIM, :].set(w_enc.T)
    b1 = jnp.asarray(b_enc, jnp.float32).reshape(1, HID_DIM)
    w2 = jnp.zeros((HID_DIM, OUT_PAD), jnp.float32).at[:, :OUT_DIM].set(w_dec.T)
    b2 = jnp.zeros((1, OUT_PAD), jnp.float32).at[0, :OUT_DIM].set(
        jnp.asarray(b_dec, jnp.float32))
    return w1, b1, w2, b2


def ae_forward(x, params, *, tm_target=1024):
    """x: [B, 500] f32. params: output of prepare_params(). Returns (feat, re_x)."""
    w1, b1, w2, b2 = params
    B = x.shape[0]

    # Batch tile: big enough to amortize per-step overhead, capped so
    # double-buffered tiles fit VMEM on every generation (incl. v7x 64 MiB).
    TM = min(tm_target, _round_up(B, 8))
    B_pad = _round_up(B, TM)

    # Zero-pad batch to a tile multiple and features to the lane-dense width.
    x_p = jnp.zeros((B_pad, IN_PAD), jnp.float32).at[:B, :IN_DIM].set(x)

    cost = pl.CostEstimate(
        flops=2 * B_pad * (IN_PAD * HID_DIM + HID_DIM * OUT_PAD),
        transcendentals=0,
        bytes_accessed=4 * (B_pad * IN_PAD            # x in
                            + IN_PAD * HID_DIM + HID_DIM      # w1, b1
                            + HID_DIM * OUT_PAD + OUT_PAD     # w2, b2
                            + B_pad * HID_DIM                 # feat out
                            + B_pad * OUT_PAD),               # rex out
    )

    feat, rex = pl.pallas_call(
        ae_forward_kernel,
        grid=(B_pad // TM,),
        in_specs=[
            pl.BlockSpec((TM, IN_PAD), lambda i: (i, 0)),        # x: batch-tiled
            pl.BlockSpec((IN_PAD, HID_DIM), lambda i: (0, 0)),   # w1: resident
            pl.BlockSpec((1, HID_DIM), lambda i: (0, 0)),        # b1: resident
            pl.BlockSpec((HID_DIM, OUT_PAD), lambda i: (0, 0)),  # w2: resident
            pl.BlockSpec((1, OUT_PAD), lambda i: (0, 0)),        # b2: resident
        ],
        out_specs=(
            pl.BlockSpec((TM, HID_DIM), lambda i: (i, 0)),
            pl.BlockSpec((TM, OUT_PAD), lambda i: (i, 0)),
        ),
        out_shape=(
            jax.ShapeDtypeStruct((B_pad, HID_DIM), jnp.float32),
            jax.ShapeDtypeStruct((B_pad, OUT_PAD), jnp.float32),
        ),
        compiler_params=pltpu.CompilerParams(
            dimension_semantics=("parallel",),   # megacore-shard batch on v7x
        ),
        cost_estimate=cost,
    )(x_p, w1, b1, w2, b2)

    # Strip batch padding and the 512->500 lane padding.
    return feat[:B], rex[:B, :OUT_DIM]


def init_params(key):
    """Deterministic PyTorch-Linear-style init (uniform(-1/sqrt(fan_in), ...))."""
    k1, k2, k3, k4 = jax.random.split(key, 4)
    bound1 = 1.0 / jnp.sqrt(IN_DIM)
    bound2 = 1.0 / jnp.sqrt(HID_DIM)
    w_enc = jax.random.uniform(k1, (HID_DIM, IN_DIM), jnp.float32, -bound1, bound1)
    b_enc = jax.random.uniform(k2, (HID_DIM,), jnp.float32, -bound1, bound1)
    w_dec = jax.random.uniform(k3, (OUT_DIM, HID_DIM), jnp.float32, -bound2, bound2)
    b_dec = jax.random.uniform(k4, (OUT_DIM,), jnp.float32, -bound2, bound2)
    return w_enc, b_enc, w_dec, b_dec


if __name__ == "__main__":
    key = jax.random.PRNGKey(0)
    k_x, k_x2, k_p = jax.random.split(key, 3)
    w_enc, b_enc, w_dec, b_dec = init_params(k_p)
    params = prepare_params(w_enc, b_enc, w_dec, b_dec)   # one-time layout prep

    def check(x, tm_target=1024):
        feat, re_x = ae_forward(x, params, tm_target=tm_target)
        jax.block_until_ready((feat, re_x))
        feat_ref = x @ w_enc.T + b_enc
        rex_ref = feat_ref @ w_dec.T + b_dec
        assert feat.shape == (x.shape[0], HID_DIM)
        assert re_x.shape == (x.shape[0], OUT_DIM)
        assert jnp.allclose(feat, feat_ref, atol=1e-4, rtol=1e-4)
        assert jnp.allclose(re_x, rex_ref, atol=1e-4, rtol=1e-4)

    # Small batch (single grid step, TM = 8).
    x_small = jax.random.normal(k_x, (8, IN_DIM), jnp.float32)
    check(x_small)

    # Non-multiple batch with a multi-step grid (exercises padding + pipelining).
    x_big = jax.random.normal(k_x2, (300, IN_DIM), jnp.float32)
    check(x_big, tm_target=128)

    # TODO(synk): loss() / _L_1st / _L_2nd are training-time losses, not part
    # of forward(); they are not implemented as kernels here.
    print("KERNEL_OK")
</pallas_src>

<mosaic_0001>
module attributes {stable_mosaic.version = 11 : i64} {
  func.func @ae_forward_kernel(%arg0: i32, %arg1: memref<8x512xf32, #tpu.memory_space<vmem>>, %arg2: memref<512x128xf32, #tpu.memory_space<vmem>>, %arg3: memref<1x128xf32, #tpu.memory_space<vmem>>, %arg4: memref<128x512xf32, #tpu.memory_space<vmem>>, %arg5: memref<1x512xf32, #tpu.memory_space<vmem>>, %arg6: memref<8x128xf32, #tpu.memory_space<vmem>>, %arg7: memref<8x512xf32, #tpu.memory_space<vmem>>) attributes {dimension_semantics = [#tpu.dimension_semantics<parallel>], iteration_bounds = array<i64: 1>, scalar_prefetch = 0 : i64, scratch_operands = 0 : i64, tpu.core_type = #tpu.core_type<tc>, window_params = [{transform_indices = @transform_0, window_bounds = array<i64: 8, 512>}, {pipeline_mode = #tpu.pipeline_mode<synchronous>, transform_indices = @transform_1, window_bounds = array<i64: 512, 128>}, {pipeline_mode = #tpu.pipeline_mode<synchronous>, transform_indices = @transform_2, window_bounds = array<i64: 1, 128>}, {pipeline_mode = #tpu.pipeline_mode<synchronous>, transform_indices = @transform_3, window_bounds = array<i64: 128, 512>}, {pipeline_mode = #tpu.pipeline_mode<synchronous>, transform_indices = @transform_4, window_bounds = array<i64: 1, 512>}, {transform_indices = @transform_5, window_bounds = array<i64: 8, 128>}, {transform_indices = @transform_6, window_bounds = array<i64: 8, 512>}]} {
    %c0 = arith.constant 0 : index
    %c0_0 = arith.constant 0 : index
    %0 = vector.load %arg1[%c0, %c0_0] : memref<8x512xf32, #tpu.memory_space<vmem>>, vector<8x512xf32>
    %c0_1 = arith.constant 0 : index
    %c0_2 = arith.constant 0 : index
    %1 = vector.load %arg2[%c0_1, %c0_2] : memref<512x128xf32, #tpu.memory_space<vmem>>, vector<512x128xf32>
    %cst = arith.constant dense<0.000000e+00> : vector<8x128xf32>
    %2 = tpu.matmul %0, %1, %cst {dimension_numbers = #tpu.dot_dimension_numbers<[1], [0], [0], [1], [0, 0, 1, 1], [], []>} : vector<8x512xf32>, vector<512x128xf32>, vector<8x128xf32> -> vector<8x128xf32>
    %c0_3 = arith.constant 0 : index
    %c0_4 = arith.constant 0 : index
    %3 = vector.load %arg3[%c0_3, %c0_4] : memref<1x128xf32, #tpu.memory_space<vmem>>, vector<1x128xf32>
    %4 = vector.broadcast %3 : vector<1x128xf32> to vector<8x128xf32>
    %5 = arith.addf %2, %4 : vector<8x128xf32>
    %c0_5 = arith.constant 0 : index
    %c0_6 = arith.constant 0 : index
    %6 = vector.load %arg6[%c0_5, %c0_6] : memref<8x128xf32, #tpu.memory_space<vmem>>, vector<8x128xf32>
    tpu.vector_store %arg6[%c0_5, %c0_6], %5 {strides = array<i32>} : memref<8x128xf32, #tpu.memory_space<vmem>>, vector<8x128xf32>,
    %c0_7 = arith.constant 0 : index
    %c0_8 = arith.constant 0 : index
    %7 = vector.load %arg4[%c0_7, %c0_8] : memref<128x512xf32, #tpu.memory_space<vmem>>, vector<128x512xf32>
    %cst_9 = arith.constant dense<0.000000e+00> : vector<8x512xf32>
    %8 = tpu.matmul %5, %7, %cst_9 {dimension_numbers = #tpu.dot_dimension_numbers<[1], [0], [0], [1], [0, 0, 1, 1], [], []>} : vector<8x128xf32>, vector<128x512xf32>, vector<8x512xf32> -> vector<8x512xf32>
    %c0_10 = arith.constant 0 : index
    %c0_11 = arith.constant 0 : index
    %9 = vector.load %arg5[%c0_10, %c0_11] : memref<1x512xf32, #tpu.memory_space<vmem>>, vector<1x512xf32>
    %10 = vector.broadcast %9 : vector<1x512xf32> to vector<8x512xf32>
    %11 = arith.addf %8, %10 : vector<8x512xf32>
    %c0_12 = arith.constant 0 : index
    %c0_13 = arith.constant 0 : index
    %12 = vector.load %arg7[%c0_12, %c0_13] : memref<8x512xf32, #tpu.memory_space<vmem>>, vector<8x512xf32>
    tpu.vector_store %arg7[%c0_12, %c0_13], %11 {strides = array<i32>} : memref<8x512xf32, #tpu.memory_space<vmem>>, vector<8x512xf32>,
    return
  }
  func.func @transform_0(%arg0: i32) -> (i32, i32) {
    %c0_i32 = arith.constant 0 : i32
    %c0_i32_0 = arith.constant 0 : i32
    return %arg0, %c0_i32 : i32, i32
  }
  func.func @transform_1(%arg0: i32) -> (i32, i32) {
    %c0_i32 = arith.constant 0 : i32
    %c0_i32_0 = arith.constant 0 : i32
    %c0_i32_1 = arith.constant 0 : i32
    return %c0_i32, %c0_i32_0 : i32, i32
  }
  func.func @transform_2(%arg0: i32) -> (i32, i32) {
    %c0_i32 = arith.constant 0 : i32
    %c0_i32_0 = arith.constant 0 : i32
    %c0_i32_1 = arith.constant 0 : i32
    return %c0_i32, %c0_i32_0 : i32, i32
  }
  func.func @transform_3(%arg0: i32) -> (i32, i32) {
    %c0_i32 = arith.constant 0 : i32
    %c0_i32_0 = arith.constant 0 : i32
    %c0_i32_1 = arith.constant 0 : i32
    return %c0_i32, %c0_i32_0 : i32, i32
  }
  func.func @transform_4(%arg0: i32) -> (i32, i32) {
    %c0_i32 = arith.constant 0 : i32
    %c0_i32_0 = arith.constant 0 : i32
    %c0_i32_1 = arith.constant 0 : i32
    return %c0_i32, %c0_i32_0 : i32, i32
  }
  func.func @transform_5(%arg0: i32) -> (i32, i32) {
    %c0_i32 = arith.constant 0 : i32
    %c0_i32_0 = arith.constant 0 : i32
    return %arg0, %c0_i32 : i32, i32
  }
  func.func @transform_6(%arg0: i32) -> (i32, i32) {
    %c0_i32 = arith.constant 0 : i32
    %c0_i32_0 = arith.constant 0 : i32
    return %arg0, %c0_i32 : i32, i32
  }
}

</mosaic_0001>

<llo_original>
// kernel: tpu_custom_call.1
$region0: #{tpu_custom_call.1}
  #allocation0 [shape = 'u32[]', space=smem, size = 0x4, offset = 0x4, fixed_abs, tag = 'smem constant byte address 0x4 - core index']
  #allocation1 [shape = 'u32[72,128]{1,0:T(1,128)}', space=vmem, size = 0x9000, scoped, tag = 'internal scratch']
  %s0 = inlined_call_operand.hbm [shape: f32[8,512], index: 0, kind: input, shape index: {}]
  %s1 = inlined_call_operand.hbm [shape: f32[512,128], index: 1, kind: input, shape index: {}]
  %s2 = inlined_call_operand.vmem [shape: f32[1,128], index: 2, kind: input, shape index: {}]
  %s3 = inlined_call_operand.hbm [shape: f32[128,512], index: 3, kind: input, shape index: {}]
  %s4 = inlined_call_operand.hbm [shape: f32[1,512], index: 4, kind: input, shape index: {}]
  %s5 = inlined_call_operand.hbm [shape: f32[8,128], index: 5, kind: output, shape index: {0}]
  %s6 = inlined_call_operand.hbm [shape: f32[8,512], index: 6, kind: output, shape index: {1}]
  %7 = xla_tuple %s5, %s6
  %s8 = sld [smem:[#allocation0]]
  $region54: #{tpu_custom_call.1} parent=0
    _
  %s10 = ssub.s32 1, %s8
  %s11 = scalar_select 0, %s10, %s8
  $region1: #{tpu_custom_call.1} parent=0
    #allocation2 [shape = 'u8[16384]{0}', space=vmem, size = 0x4000, scoped, tag = 'input window, operand 0, single buffered']
    #allocation3 [shape = 's32[1]{0}', space=sflag, size = 0x4, scoped, tag = 'scoped memory for tpu_custom_call.1']
    #allocation4 [shape = 's32[1]{0}', space=sflag, size = 0x4, scoped, tag = 'scoped memory for tpu_custom_call.1']
    #allocation5 [shape = 'u8[262144]{0}', space=vmem, size = 0x40000, scoped, tag = 'input window, operand 1, single buffered']
    #allocation6 [shape = 's32[1]{0}', space=sflag, size = 0x4, scoped, tag = 'scoped memory for tpu_custom_call.1']
    #allocation7 [shape = 'u8[262144]{0}', space=vmem, size = 0x40000, scoped, tag = 'input window, operand 3, single buffered']
    #allocation8 [shape = 'u8[2048]{0}', space=vmem, size = 0x800, scoped, tag = 'input window, operand 4, single buffered']
    #allocation9 [shape = 's32[1]{0}', space=sflag, size = 0x4, scoped, tag = 'scoped memory for tpu_custom_call.1']
    #allocation10 [shape = 'u8[4096]{0}', space=vmem, size = 0x1000, scoped, tag = 'output window, operand 0, single buffered']
    #allocation11 [shape = 'u8[16384]{0}', space=vmem, size = 0x4000, scoped, tag = 'output window, operand 1, single buffered']
    #allocation12 [shape = 's32[1]{0}', space=sflag, size = 0x4, scoped, tag = 'scoped memory for tpu_custom_call.1']
    %12 = vsyncpa [#allocation3], 0
    %13 = vsyncpa [#allocation6], 0
    %14 = vsyncpa [#allocation9], 0
    %15 = vsyncpa [#allocation4], 0
    %16 = vsyncpa [#allocation12], 0
    // Predicated region
    $region2: #{tpu_custom_call.1} parent=1 // pred_check
      _
    $region3: #{tpu_custom_call.1} parent=1 // pred_check_branch
      %18 = sbr.rel (0) target = $region5
    $region4: #{tpu_custom_call.1} parent=1 // pred_region
      %20 = vsyncadd [#allocation3], 0
      %s22 = sshll.u32 %s0, 4
      %s23 = int_to_ptr.hbm [resolvable:$true] %s22
      %s24 = sshll.u32 [#allocation2], 4
      %s25 = int_to_ptr.vmem [resolvable:$true] %s24
      %27 = dma.hbm_to_vmem [thread:$0]  %s23, 512, %s25, [#allocation3]
    $region5: #{tpu_custom_call.1} parent=1 // pred_fallthru
      _
    // Predicated region
    $region6: #{tpu_custom_call.1} parent=1 // pred_check
      _
    $region7: #{tpu_custom_call.1} parent=1 // pred_check_branch
      %29 = sbr.rel (0) target = $region9
    $region8: #{tpu_custom_call.1} parent=1 // pred_region
      %31 = vsyncadd [#allocation6], 0
      %s32 = sshll.u32 %s1, 4
      %s33 = int_to_ptr.hbm [resolvable:$true] %s32
      %s34 = sshll.u32 [#allocation5], 4
      %s35 = int_to_ptr.vmem [resolvable:$true] %s34
      %40 = dma.hbm_to_vmem [thread:$0]  %s33, 8192, %s35, [#allocation6], 128, 128, 8
    $region9: #{tpu_custom_call.1} parent=1 // pred_fallthru
      _
    // Predicated region
    $region10: #{tpu_custom_call.1} parent=1 // pred_check
      _
    $region11: #{tpu_custom_call.1} parent=1 // pred_check_branch
      %42 = sbr.rel (0) target = $region13
    $region12: #{tpu_custom_call.1} parent=1 // pred_region
      _
    $region13: #{tpu_custom_call.1} parent=1 // pred_fallthru
      _
    // Predicated region
    $region14: #{tpu_custom_call.1} parent=1 // pred_check
      _
    $region15: #{tpu_custom_call.1} parent=1 // pred_check_branch
      %44 = sbr.rel (0) target = $region17
    $region16: #{tpu_custom_call.1} parent=1 // pred_region
      %46 = vsyncadd [#allocation6], 0
      %s47 = sshll.u32 %s3, 4
      %s48 = int_to_ptr.hbm [resolvable:$true] %s47
      %s49 = sshll.u32 [#allocation7], 4
      %s50 = int_to_ptr.vmem [resolvable:$true] %s49
      %55 = dma.hbm_to_vmem [thread:$0]  %s48, 8192, %s50, [#allocation6], 512, 512, 32
    $region17: #{tpu_custom_call.1} parent=1 // pred_fallthru
      _
    // Predicated region
    $region18: #{tpu_custom_call.1} parent=1 // pred_check
      _
    $region19: #{tpu_custom_call.1} parent=1 // pred_check_branch
      %57 = sbr.rel (0) target = $region21
    $region20: #{tpu_custom_call.1} parent=1 // pred_region
      %59 = vsyncadd [#allocation9], 0
      %s61 = sshll.u32 %s4, 4
      %s62 = int_to_ptr.hbm [resolvable:$true] %s61
      %s63 = sshll.u32 [#allocation8], 4
      %s64 = int_to_ptr.vmem [resolvable:$true] %s63
      %66 = dma.hbm_to_vmem [thread:$0]  %s62, 64, %s64, [#allocation9]
    $region21: #{tpu_custom_call.1} parent=1 // pred_fallthru
      _
    // Predicated region
    $region22: #{tpu_custom_call.1} parent=1 // pred_check
      _
    $region23: #{tpu_custom_call.1} parent=1 // pred_check_branch
      %68 = sbr.rel (0) target = $region25
    $region24: #{tpu_custom_call.1} parent=1 // pred_region
      %70 = dma.done [#allocation3], 512
    $region25: #{tpu_custom_call.1} parent=1 // pred_fallthru
      _
    // Predicated region
    $region26: #{tpu_custom_call.1} parent=1 // pred_check
      _
    $region27: #{tpu_custom_call.1} parent=1 // pred_check_branch
      %72 = sbr.rel (0) target = $region29
    $region28: #{tpu_custom_call.1} parent=1 // pred_region
      %74 = dma.done [#allocation6], 8192
    $region29: #{tpu_custom_call.1} parent=1 // pred_fallthru
      _
    // Predicated region
    $region30: #{tpu_custom_call.1} parent=1 // pred_check
      _
    $region31: #{tpu_custom_call.1} parent=1 // pred_check_branch
      %76 = sbr.rel (0) target = $region33
    $region32: #{tpu_custom_call.1} parent=1 // pred_region
      %78 = dma.done [#allocation6], 8192
    $region33: #{tpu_custom_call.1} parent=1 // pred_fallthru
      _
    // Predicated region
    $region34: #{tpu_custom_call.1} parent=1 // pred_check
      _
    $region35: #{tpu_custom_call.1} parent=1 // pred_check_branch
      %80 = sbr.rel (0) target = $region37
    $region36: #{tpu_custom_call.1} parent=1 // pred_region
      %82 = dma.done [#allocation9], 64
    $region37: #{tpu_custom_call.1} parent=1 // pred_fallthru
      _
    %v83 = vld [vmem:[#allocation2] sm:$0xff]
    %v84 = vld [vmem:[#allocation2 + $0x8] sm:$0xff]
    %v85 = vld [vmem:[#allocation2 + $0x10] sm:$0xff]
    %v86 = vld [vmem:[#allocation2 + $0x18] sm:$0xff]
    %v87 = vld [vmem:[#allocation5] sm:$0xff]
    %v88 = vld [vmem:[#allocation5 + $0x8] sm:$0xff]
    %v89 = vld [vmem:[#allocation5 + $0x10] sm:$0xff]
    %v90 = vld [vmem:[#allocation5 + $0x18] sm:$0xff]
    %v91 = vld [vmem:[#allocation5 + $0x20] sm:$0xff]
    %v92 = vld [vmem:[#allocation5 + $0x28] sm:$0xff]
    %v93 = vld [vmem:[#allocation5 + $0x30] sm:$0xff]
    %v94 = vld [vmem:[#allocation5 + $0x38] sm:$0xff]
    %v95 = vld [vmem:[#allocation5 + $0x40] sm:$0xff]
    %v96 = vld [vmem:[#allocation5 + $0x48] sm:$0xff]
    %v97 = vld [vmem:[#allocation5 + $0x50] sm:$0xff]
    %v98 = vld [vmem:[#allocation5 + $0x58] sm:$0xff]
    %v99 = vld [vmem:[#allocation5 + $0x60] sm:$0xff]
    %v100 = vld [vmem:[#allocation5 + $0x68] sm:$0xff]
    %v101 = vld [vmem:[#allocation5 + $0x70] sm:$0xff]
    %v102 = vld [vmem:[#allocation5 + $0x78] sm:$0xff]
    %v103 = vld [vmem:[#allocation5 + $0x80] sm:$0xff]
    %v104 = vld [vmem:[#allocation5 + $0x88] sm:$0xff]
    %v105 = vld [vmem:[#allocation5 + $0x90] sm:$0xff]
    %v106 = vld [vmem:[#allocation5 + $0x98] sm:$0xff]
    %v107 = vld [vmem:[#allocation5 + $0xa0] sm:$0xff]
    %v108 = vld [vmem:[#allocation5 + $0xa8] sm:$0xff]
    %v109 = vld [vmem:[#allocation5 + $0xb0] sm:$0xff]
    %v110 = vld [vmem:[#allocation5 + $0xb8] sm:$0xff]
    %v111 = vld [vmem:[#allocation5 + $0xc0] sm:$0xff]
    %v112 = vld [vmem:[#allocation5 + $0xc8] sm:$0xff]
    %v113 = vld [vmem:[#allocation5 + $0xd0] sm:$0xff]
    %v114 = vld [vmem:[#allocation5 + $0xd8] sm:$0xff]
    %v115 = vld [vmem:[#allocation5 + $0xe0] sm:$0xff]
    %v116 = vld [vmem:[#allocation5 + $0xe8] sm:$0xff]
    %v117 = vld [vmem:[#allocation5 + $0xf0] sm:$0xff]
    %v118 = vld [vmem:[#allocation5 + $0xf8] sm:$0xff]
    %v119 = vld [vmem:[#allocation5 + $0x100] sm:$0xff]
    %v120 = vld [vmem:[#allocation5 + $0x108] sm:$0xff]
    %v121 = vld [vmem:[#allocation5 + $0x110] sm:$0xff]
    %v122 = vld [vmem:[#allocation5 + $0x118] sm:$0xff]
    %v123 = vld [vmem:[#allocation5 + $0x120] sm:$0xff]
    %v124 = vld [vmem:[#allocation5 + $0x128] sm:$0xff]
    %v125 = vld [vmem:[#allocation5 + $0x130] sm:$0xff]
    %v126 = vld [vmem:[#allocation5 + $0x138] sm:$0xff]
    %v127 = vld [vmem:[#allocation5 + $0x140] sm:$0xff]
    %v128 = vld [vmem:[#allocation5 + $0x148] sm:$0xff]
    %v129 = vld [vmem:[#allocation5 + $0x150] sm:$0xff]
    %v130 = vld [vmem:[#allocation5 + $0x158] sm:$0xff]
    %v131 = vld [vmem:[#allocation5 + $0x160] sm:$0xff]
    %v132 = vld [vmem:[#allocation5 + $0x168] sm:$0xff]
    %v133 = vld [vmem:[#allocation5 + $0x170] sm:$0xff]
    %v134 = vld [vmem:[#allocation5 + $0x178] sm:$0xff]
    %v135 = vld [vmem:[#allocation5 + $0x180] sm:$0xff]
    %v136 = vld [vmem:[#allocation5 + $0x188] sm:$0xff]
    %v137 = vld [vmem:[#allocation5 + $0x190] sm:$0xff]
    %v138 = vld [vmem:[#allocation5 + $0x198] sm:$0xff]
    %v139 = vld [vmem:[#allocation5 + $0x1a0] sm:$0xff]
    %v140 = vld [vmem:[#allocation5 + $0x1a8] sm:$0xff]
    %v141 = vld [vmem:[#allocation5 + $0x1b0] sm:$0xff]
    %v142 = vld [vmem:[#allocation5 + $0x1b8] sm:$0xff]
    %v143 = vld [vmem:[#allocation5 + $0x1c0] sm:$0xff]
    %v144 = vld [vmem:[#allocation5 + $0x1c8] sm:$0xff]
    %v145 = vld [vmem:[#allocation5 + $0x1d0] sm:$0xff]
    %v146 = vld [vmem:[#allocation5 + $0x1d8] sm:$0xff]
    %v147 = vld [vmem:[#allocation5 + $0x1e0] sm:$0xff]
    %v148 = vld [vmem:[#allocation5 + $0x1e8] sm:$0xff]
    %v149 = vld [vmem:[#allocation5 + $0x1f0] sm:$0xff]
    %v150 = vld [vmem:[#allocation5 + $0x1f8] sm:$0xff]
    %v151 = vld [vmem:[%s2] sm:$0x1]
    %v153 = vperm.slane %v151, 0
    %155 = vmatpush.msra.mxu0 %v102
    %156 = vmatpush.msra.mxu0 %v101
    %157 = vmatpush.msra.mxu0 %v100
    %158 = vmatpush.msra.mxu0 %v99
    %159 = vmatpush.msra.mxu0 %v98
    %160 = vmatpush.msra.mxu0 %v97
    %161 = vmatpush.msra.mxu0 %v96
    %162 = vmatpush.msra.mxu0 %v95
    %163 = vmatpush.msra.mxu0 %v94
    %164 = vmatpush.msra.mxu0 %v93
    %165 = vmatpush.msra.mxu0 %v92
    %166 = vmatpush.msra.mxu0 %v91
    %167 = vmatpush.msra.mxu0 %v90
    %168 = vmatpush.msra.mxu0 %v89
    %169 = vmatpush.msra.mxu0 %v88
    %170 = vmatpush.msra.mxu0 %v87
    %171 = vmatmul.f32.gmra.mxu0 %v83
    %v172 = vpop.f32.mrf.mxu0
    %v173 = vadd.f32 %v153, %v172
    %174 = vdwg.mxu0
    %175 = vmatpush.msra.mxu0 %v118
    %176 = vmatpush.msra.mxu0 %v117
    %177 = vmatpush.msra.mxu0 %v116
    %178 = vmatpush.msra.mxu0 %v115
    %179 = vmatpush.msra.mxu0 %v114
    %180 = vmatpush.msra.mxu0 %v113
    %181 = vmatpush.msra.mxu0 %v112
    %182 = vmatpush.msra.mxu0 %v111
    %183 = vmatpush.msra.mxu0 %v110
    %184 = vmatpush.msra.mxu0 %v109
    %185 = vmatpush.msra.mxu0 %v108
    %186 = vmatpush.msra.mxu0 %v107
    %187 = vmatpush.msra.mxu0 %v106
    %188 = vmatpush.msra.mxu0 %v105
    %189 = vmatpush.msra.mxu0 %v104
    %190 = vmatpush.msra.mxu0 %v103
    %191 = vmatmul.f32.gmra.mxu0 %v84
    %v192 = vpop.f32.mrf.mxu0
    %v193 = vadd.f32 %v173, %v192
    %194 = vdwg.mxu0
    %195 = vmatpush.msra.mxu0 %v134
    %196 = vmatpush.msra.mxu0 %v133
    %197 = vmatpush.msra.mxu0 %v132
    %198 = vmatpush.msra.mxu0 %v131
    %199 = vmatpush.msra.mxu0 %v130
    %200 = vmatpush.msra.mxu0 %v129
    %201 = vmatpush.msra.mxu0 %v128
    %202 = vmatpush.msra.mxu0 %v127
    %203 = vmatpush.msra.mxu0 %v126
    %204 = vmatpush.msra.mxu0 %v125
    %205 = vmatpush.msra.mxu0 %v124
    %206 = vmatpush.msra.mxu0 %v123
    %207 = vmatpush.msra.mxu0 %v122
    %208 = vmatpush.msra.mxu0 %v121
    %209 = vmatpush.msra.mxu0 %v120
    %210 = vmatpush.msra.mxu0 %v119
    %211 = vmatmul.f32.gmra.mxu0 %v85
    %v212 = vpop.f32.mrf.mxu0
    %v213 = vadd.f32 %v193, %v212
    %214 = vdwg.mxu0
    %215 = vmatpush.msra.mxu0 %v150
    %216 = vmatpush.msra.mxu0 %v149
    %217 = vmatpush.msra.mxu0 %v148
    %218 = vmatpush.msra.mxu0 %v147
    %219 = vmatpush.msra.mxu0 %v146
    %220 = vmatpush.msra.mxu0 %v145
    %221 = vmatpush.msra.mxu0 %v144
    %222 = vmatpush.msra.mxu0 %v143
    %223 = vmatpush.msra.mxu0 %v142
    %224 = vmatpush.msra.mxu0 %v141
    %225 = vmatpush.msra.mxu0 %v140
    %226 = vmatpush.msra.mxu0 %v139
    %227 = vmatpush.msra.mxu0 %v138
    %228 = vmatpush.msra.mxu0 %v137
    %229 = vmatpush.msra.mxu0 %v136
    %230 = vmatpush.msra.mxu0 %v135
    %231 = vmatmul.f32.gmra.mxu0 %v86
    %v232 = vpop.f32.mrf.mxu0
    %v233 = vadd.f32 %v213, %v232
    %234 = vdwg.mxu0
    %235 = vst [vmem:[#allocation10] sm:$0xff] %v233
    %v236 = vld [vmem:[#allocation7] sm:$0xff]
    %v237 = vld [vmem:[#allocation7 + $0x8] sm:$0xff]
    %v238 = vld [vmem:[#allocation7 + $0x10] sm:$0xff]
    %v239 = vld [vmem:[#allocation7 + $0x18] sm:$0xff]
    %v240 = vld [vmem:[#allocation7 + $0x20] sm:$0xff]
    %v241 = vld [vmem:[#allocation7 + $0x28] sm:$0xff]
    %v242 = vld [vmem:[#allocation7 + $0x30] sm:$0xff]
    %v243 = vld [vmem:[#allocation7 + $0x38] sm:$0xff]
    %v244 = vld [vmem:[#allocation7 + $0x40] sm:$0xff]
    %v245 = vld [vmem:[#allocation7 + $0x48] sm:$0xff]
    %v246 = vld [vmem:[#allocation7 + $0x50] sm:$0xff]
    %v247 = vld [vmem:[#allocation7 + $0x58] sm:$0xff]
    %v248 = vld [vmem:[#allocation7 + $0x60] sm:$0xff]
    %v249 = vld [vmem:[#allocation7 + $0x68] sm:$0xff]
    %v250 = vld [vmem:[#allocation7 + $0x70] sm:$0xff]
    %v251 = vld [vmem:[#allocation7 + $0x78] sm:$0xff]
    %v252 = vld [vmem:[#allocation7 + $0x80] sm:$0xff]
    %v253 = vld [vmem:[#allocation7 + $0x88] sm:$0xff]
    %v254 = vld [vmem:[#allocation7 + $0x90] sm:$0xff]
    %v255 = vld [vmem:[#allocation7 + $0x98] sm:$0xff]
    %v256 = vld [vmem:[#allocation7 + $0xa0] sm:$0xff]
    %v257 = vld [vmem:[#allocation7 + $0xa8] sm:$0xff]
    %v258 = vld [vmem:[#allocation7 + $0xb0] sm:$0xff]
    %v259 = vld [vmem:[#allocation7 + $0xb8] sm:$0xff]
    %v260 = vld [vmem:[#allocation7 + $0xc0] sm:$0xff]
    %v261 = vld [vmem:[#allocation7 + $0xc8] sm:$0xff]
    %v262 = vld [vmem:[#allocation7 + $0xd0] sm:$0xff]
    %v263 = vld [vmem:[#allocation7 + $0xd8] sm:$0xff]
    %v264 = vld [vmem:[#allocation7 + $0xe0] sm:$0xff]
    %v265 = vld [vmem:[#allocation7 + $0xe8] sm:$0xff]
    %v266 = vld [vmem:[#allocation7 + $0xf0] sm:$0xff]
    %v267 = vld [vmem:[#allocation7 + $0xf8] sm:$0xff]
    %v268 = vld [vmem:[#allocation7 + $0x100] sm:$0xff]
    %v269 = vld [vmem:[#allocation7 + $0x108] sm:$0xff]
    %v270 = vld [vmem:[#allocation7 + $0x110] sm:$0xff]
    %v271 = vld [vmem:[#allocation7 + $0x118] sm:$0xff]
    %v272 = vld [vmem:[#allocation7 + $0x120] sm:$0xff]
    %v273 = vld [vmem:[#allocation7 + $0x128] sm:$0xff]
    %v274 = vld [vmem:[#allocation7 + $0x130] sm:$0xff]
    %v275 = vld [vmem:[#allocation7 + $0x138] sm:$0xff]
    %v276 = vld [vmem:[#allocation7 + $0x140] sm:$0xff]
    %v277 = vld [vmem:[#allocation7 + $0x148] sm:$0xff]
    %v278 = vld [vmem:[#allocation7 + $0x150] sm:$0xff]
    %v279 = vld [vmem:[#allocation7 + $0x158] sm:$0xff]
    %v280 = vld [vmem:[#allocation7 + $0x160] sm:$0xff]
    %v281 = vld [vmem:[#allocation7 + $0x168] sm:$0xff]
    %v282 = vld [vmem:[#allocation7 + $0x170] sm:$0xff]
    %v283 = vld [vmem:[#allocation7 + $0x178] sm:$0xff]
    %v284 = vld [vmem:[#allocation7 + $0x180] sm:$0xff]
    %v285 = vld [vmem:[#allocation7 + $0x188] sm:$0xff]
    %v286 = vld [vmem:[#allocation7 + $0x190] sm:$0xff]
    %v287 = vld [vmem:[#allocation7 + $0x198] sm:$0xff]
    %v288 = vld [vmem:[#allocation7 + $0x1a0] sm:$0xff]
    %v289 = vld [vmem:[#allocation7 + $0x1a8] sm:$0xff]
    %v290 = vld [vmem:[#allocation7 + $0x1b0] sm:$0xff]
    %v291 = vld [vmem:[#allocation7 + $0x1b8] sm:$0xff]
    %v292 = vld [vmem:[#allocation7 + $0x1c0] sm:$0xff]
    %v293 = vld [vmem:[#allocation7 + $0x1c8] sm:$0xff]
    %v294 = vld [vmem:[#allocation7 + $0x1d0] sm:$0xff]
    %v295 = vld [vmem:[#allocation7 + $0x1d8] sm:$0xff]
    %v296 = vld [vmem:[#allocation7 + $0x1e0] sm:$0xff]
    %v297 = vld [vmem:[#allocation7 + $0x1e8] sm:$0xff]
    %v298 = vld [vmem:[#allocation7 + $0x1f0] sm:$0xff]
    %v299 = vld [vmem:[#allocation7 + $0x1f8] sm:$0xff]
    %v300 = vld [vmem:[#allocation8] sm:$0xf]
    %v302 = vperm.slane %v300, 0
    %v303 = vperm.slane %v300, 1
    %v304 = vperm.slane %v300, 2
    %v305 = vperm.slane %v300, 3
    %310 = vmatpush.msra.mxu0 %v296
    %311 = vmatpush.msra.mxu0 %v292
    %312 = vmatpush.msra.mxu0 %v288
    %313 = vmatpush.msra.mxu0 %v284
    %314 = vmatpush.msra.mxu0 %v280
    %315 = vmatpush.msra.mxu0 %v276
    %316 = vmatpush.msra.mxu0 %v272
    %317 = vmatpush.msra.mxu0 %v268
    %318 = vmatpush.msra.mxu0 %v264
    %319 = vmatpush.msra.mxu0 %v260
    %320 = vmatpush.msra.mxu0 %v256
    %321 = vmatpush.msra.mxu0 %v252
    %322 = vmatpush.msra.mxu0 %v248
    %323 = vmatpush.msra.mxu0 %v244
    %324 = vmatpush.msra.mxu0 %v240
    %325 = vmatpush.msra.mxu0 %v236
    %326 = vmatmul.f32.gmra.mxu0 %v233
    %v327 = vpop.f32.mrf.mxu0
    %v328 = vadd.f32 %v302, %v327
    %329 = vdwg.mxu0
    %330 = vmatpush.msra.mxu0 %v297
    %331 = vmatpush.msra.mxu0 %v293
    %332 = vmatpush.msra.mxu0 %v289
    %333 = vmatpush.msra.mxu0 %v285
    %334 = vmatpush.msra.mxu0 %v281
    %335 = vmatpush.msra.mxu0 %v277
    %336 = vmatpush.msra.mxu0 %v273
    %337 = vmatpush.msra.mxu0 %v269
    %338 = vmatpush.msra.mxu0 %v265
    %339 = vmatpush.msra.mxu0 %v261
    %340 = vmatpush.msra.mxu0 %v257
    %341 = vmatpush.msra.mxu0 %v253
    %342 = vmatpush.msra.mxu0 %v249
    %343 = vmatpush.msra.mxu0 %v245
    %344 = vmatpush.msra.mxu0 %v241
    %345 = vmatpush.msra.mxu0 %v237
    %346 = vmatmul.f32.gmra.mxu0 %v233
    %v347 = vpop.f32.mrf.mxu0
    %v348 = vadd.f32 %v303, %v347
    %349 = vdwg.mxu0
    %350 = vmatpush.msra.mxu0 %v298
    %351 = vmatpush.msra.mxu0 %v294
    %352 = vmatpush.msra.mxu0 %v290
    %353 = vmatpush.msra.mxu0 %v286
    %354 = vmatpush.msra.mxu0 %v282
    %355 = vmatpush.msra.mxu0 %v278
    %356 = vmatpush.msra.mxu0 %v274
    %357 = vmatpush.msra.mxu0 %v270
    %358 = vmatpush.msra.mxu0 %v266
    %359 = vmatpush.msra.mxu0 %v262
    %360 = vmatpush.msra.mxu0 %v258
    %361 = vmatpush.msra.mxu0 %v254
    %362 = vmatpush.msra.mxu0 %v250
    %363 = vmatpush.msra.mxu0 %v246
    %364 = vmatpush.msra.mxu0 %v242
    %365 = vmatpush.msra.mxu0 %v238
    %366 = vmatmul.f32.gmra.mxu0 %v233
    %v367 = vpop.f32.mrf.mxu0
    %v368 = vadd.f32 %v304, %v367
    %369 = vdwg.mxu0
    %370 = vmatpush.msra.mxu0 %v299
    %371 = vmatpush.msra.mxu0 %v295
    %372 = vmatpush.msra.mxu0 %v291
    %373 = vmatpush.msra.mxu0 %v287
    %374 = vmatpush.msra.mxu0 %v283
    %375 = vmatpush.msra.mxu0 %v279
    %376 = vmatpush.msra.mxu0 %v275
    %377 = vmatpush.msra.mxu0 %v271
    %378 = vmatpush.msra.mxu0 %v267
    %379 = vmatpush.msra.mxu0 %v263
    %380 = vmatpush.msra.mxu0 %v259
    %381 = vmatpush.msra.mxu0 %v255
    %382 = vmatpush.msra.mxu0 %v251
    %383 = vmatpush.msra.mxu0 %v247
    %384 = vmatpush.msra.mxu0 %v243
    %385 = vmatpush.msra.mxu0 %v239
    %386 = vmatmul.f32.gmra.mxu0 %v233
    %v387 = vpop.f32.mrf.mxu0
    %v388 = vadd.f32 %v305, %v387
    %389 = vdwg.mxu0
    %390 = vst [vmem:[#allocation11] sm:$0xff] %v328
    %391 = vst [vmem:[#allocation11 + $0x8] sm:$0xff] %v348
    %392 = vst [vmem:[#allocation11 + $0x10] sm:$0xff] %v368
    %393 = vst [vmem:[#allocation11 + $0x18] sm:$0xff] %v388
    // Predicated region
    $region38: #{tpu_custom_call.1} parent=1 // pred_check
      _
    $region39: #{tpu_custom_call.1} parent=1 // pred_check_branch
      %395 = sbr.rel (0) target = $region41
    $region40: #{tpu_custom_call.1} parent=1 // pred_region
      %397 = vsyncadd [#allocation4], 0
      %s399 = sshll.u32 [#allocation10], 4
      %s400 = int_to_ptr.vmem [resolvable:$true] %s399
      %s401 = sshll.u32 %s5, 4
      %s402 = int_to_ptr.hbm [resolvable:$true] %s401
      %404 = dma.vmem_to_hbm [thread:$0]  %s400, 128, %s402, [#allocation4]
    $region41: #{tpu_custom_call.1} parent=1 // pred_fallthru
      _
    // Predicated region
    $region42: #{tpu_custom_call.1} parent=1 // pred_check
      _
    $region43: #{tpu_custom_call.1} parent=1 // pred_check_branch
      %406 = sbr.rel (0) target = $region45
    $region44: #{tpu_custom_call.1} parent=1 // pred_region
      %408 = vsyncadd [#allocation12], 0
      %s410 = sshll.u32 [#allocation11], 4
      %s411 = int_to_ptr.vmem [resolvable:$true] %s410
      %s412 = sshll.u32 %s6, 4
      %s413 = int_to_ptr.hbm [resolvable:$true] %s412
      %415 = dma.vmem_to_hbm [thread:$0]  %s411, 512, %s413, [#allocation12]
    $region45: #{tpu_custom_call.1} parent=1 // pred_fallthru
      _
    // Predicated region
    $region46: #{tpu_custom_call.1} parent=1 // pred_check
      _
    $region47: #{tpu_custom_call.1} parent=1 // pred_check_branch
      %417 = sbr.rel (0) target = $region49
    $region48: #{tpu_custom_call.1} parent=1 // pred_region
      %419 = dma.done [#allocation4], 128
    $region49: #{tpu_custom_call.1} parent=1 // pred_fallthru
      _
    // Predicated region
    $region50: #{tpu_custom_call.1} parent=1 // pred_check
      _
    $region51: #{tpu_custom_call.1} parent=1 // pred_check_branch
      %421 = sbr.rel (0) target = $region53
    $region52: #{tpu_custom_call.1} parent=1 // pred_region
      %423 = dma.done [#allocation12], 512
    $region53: #{tpu_custom_call.1} parent=1 // pred_fallthru
      _
    %424 = vsyncpa [#allocation3], 1
    %425 = vsyncpa [#allocation6], 1
    %426 = vsyncpa [#allocation9], 1
    %427 = vsyncpa [#allocation4], 1
    %428 = vsyncpa [#allocation12], 1

</llo_original>
